<compile_context>
chip_gen: v7x
topology: tpu7x:2x2x1
jax: 0.10.0
libtpu: 0.0.40
codegen_flags: <defaults>
</compile_context>

<pallas_src>
import functools
import math

import jax
import jax.numpy as jnp
from jax.experimental import pallas as pl
from jax.experimental.pallas import tpu as pltpu

# ---- model hyperparameters (from the PyTorch module) ----
PATCH_DIM = 16
HIDDEN = 32
NUM_HEADS = 4
HEAD_DIM = HIDDEN // NUM_HEADS
NUM_CLASSES = 10


def _attention_pool_kernel(
    tb,           # static: samples per grid step
    seq,          # static: patches per sample
    x_ref,        # (tb*seq, PATCH_DIM)   flat rows of the batch tile
    w_score_ref,  # (PATCH_DIM, NUM_HEADS)   folded encoder+K+fixed-query (+scale)
    w_xv_ref,     # (PATCH_DIM, HIDDEN)      folded encoder+V
    e_rep_ref,    # (NUM_HEADS, HIDDEN)      0/1 head-expansion matrix
    w_oc_ref,     # (HIDDEN, NUM_CLASSES)    folded out_proj+classifier
    b_oc_ref,     # (1, NUM_CLASSES)         folded biases
    out_ref,      # (tb, NUM_CLASSES)
):
    n = tb * seq
    xf = x_ref[...]                                                           # (n, P)

    # Per-head attention scores and V rows for the whole batch tile (two MXU matmuls).
    scores = jnp.dot(xf, w_score_ref[...], preferred_element_type=jnp.float32)  # (n, NH)
    v = jnp.dot(xf, w_xv_ref[...], preferred_element_type=jnp.float32)          # (n, H)

    # Softmax over the sequence axis, per sample and per head.
    # (n, NH) -> (tb, seq, NH): seq == 8 matches the sublane tiling, so this is layout-free.
    s3 = scores.reshape(tb, seq, NUM_HEADS)
    m = jnp.max(s3, axis=1, keepdims=True)
    e = jnp.exp(s3 - m)
    p = e / jnp.sum(e, axis=1, keepdims=True)                                  # (tb, seq, NH)

    # Expand per-head probabilities to the 32 hidden lanes with one tiny matmul
    # (avoids lane slicing / concatenation), then head-weighted sum of V on the VPU.
    p_rep = jnp.dot(p.reshape(n, NUM_HEADS), e_rep_ref[...],
                    preferred_element_type=jnp.float32)                        # (n, H)
    o = (p_rep * v).reshape(tb, seq, HIDDEN).sum(axis=1)                       # (tb, H)

    # Folded out_proj + classifier.
    out_ref[...] = (jnp.dot(o, w_oc_ref[...], preferred_element_type=jnp.float32)
                    + b_oc_ref[...])                                           # (tb, C)


def attention_pool(x, params, *, tb=None):
    """x: (B, S, PATCH_DIM) float32 -> logits (B, NUM_CLASSES)."""
    B, S, P = x.shape
    assert P == PATCH_DIM

    # ---------- batch-independent weight folding (plain XLA, outside the kernel) ----------
    w_enc, b_enc = params["w_enc"], params["b_enc"]
    scale = 1.0 / math.sqrt(HEAD_DIM)

    # fixed-query projection, hoisted out of the kernel
    q = params["query"] @ params["w_q"] + params["b_q"]                        # (1, H)
    qh = q.reshape(NUM_HEADS, HEAD_DIM)                                        # (NH, D)

    # encoder folded into K, then fixed query folded into a (P, NH) score matrix.
    # (the score bias is constant along S, so it cancels in the softmax and is dropped)
    w_xk = w_enc @ params["w_k"]                                               # (P, H)
    w_score = jnp.einsum("phd,hd->ph",
                         w_xk.reshape(PATCH_DIM, NUM_HEADS, HEAD_DIM), qh) * scale   # (P, NH)

    # encoder folded into V; the V bias is folded into the final bias below
    # (softmax weights sum to 1 per head, so b_xv contributes a constant to o).
    w_xv = w_enc @ params["w_v"]                                               # (P, H)
    b_xv = b_enc @ params["w_v"] + params["b_v"]                               # (1, H)

    # out_proj + classifier folded into one matmul
    w_oc = params["w_o"] @ params["w_cls"]                                     # (H, C)
    b_oc = b_xv @ w_oc + params["b_o"] @ params["w_cls"] + params["b_cls"]     # (1, C)

    # head-expansion matrix: row h has ones on lanes [h*D, (h+1)*D)
    e_rep = jnp.repeat(jnp.eye(NUM_HEADS, dtype=jnp.float32), HEAD_DIM, axis=1)  # (NH, H)

    # ---------- batch tiling ----------
    if tb is None:
        # sublane-aligned tile, capped for VMEM, >=2 grid steps for realistic B (v7x megacore)
        tb = min(256, max(8, ((B // 2) // 8) * 8))
    else:
        tb = max(8, ((int(tb) + 7) // 8) * 8)
    b_pad = ((B + tb - 1) // tb) * tb
    grid = b_pad // tb

    # one large contiguous row slab per grid step (zero-pad ragged batches; padded rows
    # produce finite logits that are sliced away below)
    xf = x.reshape(B * S, PATCH_DIM)
    if b_pad != B:
        xf = jnp.pad(xf, ((0, (b_pad - B) * S), (0, 0)))

    in_specs = [
        pl.BlockSpec((tb * S, PATCH_DIM), lambda b: (b, 0)),                   # x rows
        pl.BlockSpec((PATCH_DIM, NUM_HEADS), lambda b: (0, 0)),                # w_score
        pl.BlockSpec((PATCH_DIM, HIDDEN), lambda b: (0, 0)),                   # w_xv
        pl.BlockSpec((NUM_HEADS, HIDDEN), lambda b: (0, 0)),                   # e_rep
        pl.BlockSpec((HIDDEN, NUM_CLASSES), lambda b: (0, 0)),                 # w_oc
        pl.BlockSpec((1, NUM_CLASSES), lambda b: (0, 0)),                      # b_oc
    ]
    out_specs = pl.BlockSpec((tb, NUM_CLASSES), lambda b: (b, 0))

    out = pl.pallas_call(
        functools.partial(_attention_pool_kernel, tb, S),
        out_shape=jax.ShapeDtypeStruct((b_pad, NUM_CLASSES), jnp.float32),
        grid_spec=pltpu.PrefetchScalarGridSpec(
            num_scalar_prefetch=0,
            grid=(grid,),
            in_specs=in_specs,
            out_specs=out_specs,
        ),
        compiler_params=pltpu.CompilerParams(
            dimension_semantics=("parallel",),
        ),
    )(xf, w_score, w_xv, e_rep, w_oc, b_oc)

    return out[:B]


def reference_attention_pool(x, params):
    """Pure-JAX reference mirroring nn.MultiheadAttention semantics (fixed query), unfused."""
    B = x.shape[0]
    h = x @ params["w_enc"] + params["b_enc"]                                  # (B, S, H)
    q = params["query"] @ params["w_q"] + params["b_q"]                        # (1, H)
    q = jnp.broadcast_to(q[None], (B, 1, HIDDEN))                              # (B, 1, H)
    k = h @ params["w_k"] + params["b_k"]                                      # (B, S, H)
    v = h @ params["w_v"] + params["b_v"]                                      # (B, S, H)

    def split(t):  # (B, L, H) -> (B, NH, L, D)
        Bq, L, _ = t.shape
        return t.reshape(Bq, L, NUM_HEADS, HEAD_DIM).transpose(0, 2, 1, 3)

    qh, kh, vh = split(q), split(k), split(v)
    scores = jnp.einsum("bhqd,bhkd->bhqk", qh, kh) / math.sqrt(HEAD_DIM)
    p = jax.nn.softmax(scores, axis=-1)
    oh = jnp.einsum("bhqk,bhkd->bhqd", p, vh)                                  # (B, NH, 1, D)
    o = oh.transpose(0, 2, 1, 3).reshape(B, 1, HIDDEN)
    attn_out = o @ params["w_o"] + params["b_o"]                               # (B, 1, H)
    return attn_out[:, 0, :] @ params["w_cls"] + params["b_cls"]               # (B, C)


def init_params(key):
    ks = jax.random.split(key, 12)
    scale = 0.1
    return {
        "query": jax.random.uniform(ks[0], (1, HIDDEN), jnp.float32),
        "w_enc": scale * jax.random.normal(ks[1], (PATCH_DIM, HIDDEN), jnp.float32),
        "b_enc": scale * jax.random.normal(ks[2], (1, HIDDEN), jnp.float32),
        "w_q": scale * jax.random.normal(ks[3], (HIDDEN, HIDDEN), jnp.float32),
        "b_q": scale * jax.random.normal(ks[4], (1, HIDDEN), jnp.float32),
        "w_k": scale * jax.random.normal(ks[5], (HIDDEN, HIDDEN), jnp.float32),
        "b_k": scale * jax.random.normal(ks[6], (1, HIDDEN), jnp.float32),
        "w_v": scale * jax.random.normal(ks[7], (HIDDEN, HIDDEN), jnp.float32),
        "b_v": scale * jax.random.normal(ks[8], (1, HIDDEN), jnp.float32),
        "w_o": scale * jax.random.normal(ks[9], (HIDDEN, HIDDEN), jnp.float32),
        "b_o": jnp.zeros((1, HIDDEN), jnp.float32),
        "w_cls": scale * jax.random.normal(ks[10], (HIDDEN, NUM_CLASSES), jnp.float32),
        "b_cls": scale * jax.random.normal(ks[11], (1, NUM_CLASSES), jnp.float32),
    }


if __name__ == "__main__":
    key = jax.random.PRNGKey(0)
    k_params, k_x1, k_x2 = jax.random.split(key, 3)
    params = init_params(k_params)
    S = 8

    # main case: B=16 -> tb=8, grid of 2 (both v7x TensorCores get work)
    x1 = jax.random.normal(k_x1, (16, S, PATCH_DIM), jnp.float32)
    out1 = jax.block_until_ready(attention_pool(x1, params))
    ref1 = reference_attention_pool(x1, params)
    assert out1.shape == (16, NUM_CLASSES)
    assert jnp.allclose(out1, ref1, atol=1e-5, rtol=1e-5), (out1, ref1)

    # ragged batch exercises the zero-padding path
    x2 = jax.random.normal(k_x2, (13, S, PATCH_DIM), jnp.float32)
    out2 = jax.block_until_ready(attention_pool(x2, params))
    ref2 = reference_attention_pool(x2, params)
    assert out2.shape == (13, NUM_CLASSES)
    assert jnp.allclose(out2, ref2, atol=1e-5, rtol=1e-5), (out2, ref2)

    print("KERNEL_OK")
</pallas_src>

<mosaic_0001>
module attributes {stable_mosaic.version = 11 : i64} {
  func.func @_attention_pool_kernel(%arg0: i32, %arg1: memref<64x16xf32, #tpu.memory_space<vmem>>, %arg2: memref<16x4xf32, #tpu.memory_space<vmem>>, %arg3: memref<16x32xf32, #tpu.memory_space<vmem>>, %arg4: memref<4x32xf32, #tpu.memory_space<vmem>>, %arg5: memref<32x10xf32, #tpu.memory_space<vmem>>, %arg6: memref<1x10xf32, #tpu.memory_space<vmem>>, %arg7: memref<8x10xf32, #tpu.memory_space<vmem>>) attributes {dimension_semantics = [#tpu.dimension_semantics<parallel>], iteration_bounds = array<i64: 2>, scalar_prefetch = 0 : i64, scratch_operands = 0 : i64, tpu.core_type = #tpu.core_type<tc>, window_params = [{transform_indices = @transform_0, window_bounds = array<i64: 64, 16>}, {pipeline_mode = #tpu.pipeline_mode<synchronous>, transform_indices = @transform_1, window_bounds = array<i64: 16, 4>}, {pipeline_mode = #tpu.pipeline_mode<synchronous>, transform_indices = @transform_2, window_bounds = array<i64: 16, 32>}, {pipeline_mode = #tpu.pipeline_mode<synchronous>, transform_indices = @transform_3, window_bounds = array<i64: 4, 32>}, {pipeline_mode = #tpu.pipeline_mode<synchronous>, transform_indices = @transform_4, window_bounds = array<i64: 32, 10>}, {pipeline_mode = #tpu.pipeline_mode<synchronous>, transform_indices = @transform_5, window_bounds = array<i64: 1, 10>}, {transform_indices = @transform_6, window_bounds = array<i64: 8, 10>}]} {
    %c0 = arith.constant 0 : index
    %c0_0 = arith.constant 0 : index
    %0 = vector.load %arg1[%c0, %c0_0] : memref<64x16xf32, #tpu.memory_space<vmem>>, vector<64x16xf32>
    %c0_1 = arith.constant 0 : index
    %c0_2 = arith.constant 0 : index
    %1 = vector.load %arg2[%c0_1, %c0_2] : memref<16x4xf32, #tpu.memory_space<vmem>>, vector<16x4xf32>
    %cst = arith.constant dense<0.000000e+00> : vector<64x4xf32>
    %2 = tpu.matmul %0, %1, %cst {dimension_numbers = #tpu.dot_dimension_numbers<[1], [0], [0], [1], [0, 0, 1, 1], [], []>} : vector<64x16xf32>, vector<16x4xf32>, vector<64x4xf32> -> vector<64x4xf32>
    %c0_3 = arith.constant 0 : index
    %c0_4 = arith.constant 0 : index
    %3 = vector.load %arg3[%c0_3, %c0_4] : memref<16x32xf32, #tpu.memory_space<vmem>>, vector<16x32xf32>
    %cst_5 = arith.constant dense<0.000000e+00> : vector<64x32xf32>
    %4 = tpu.matmul %0, %3, %cst_5 {dimension_numbers = #tpu.dot_dimension_numbers<[1], [0], [0], [1], [0, 0, 1, 1], [], []>} : vector<64x16xf32>, vector<16x32xf32>, vector<64x32xf32> -> vector<64x32xf32>
    %5 = vector.shape_cast %2 : vector<64x4xf32> to vector<8x8x4xf32>
    %cst_6 = arith.constant dense<0xFF800000> : vector<8x4xf32>
    %6 = vector.multi_reduction <maximumf>, %5, %cst_6 [1] : vector<8x8x4xf32> to vector<8x4xf32>
    %7 = vector.shape_cast %6 : vector<8x4xf32> to vector<8x1x4xf32>
    %8 = vector.broadcast %7 : vector<8x1x4xf32> to vector<8x8x4xf32>
    %9 = arith.subf %5, %8 : vector<8x8x4xf32>
    %10 = math.exp %9 : vector<8x8x4xf32>
    %cst_7 = arith.constant dense<0.000000e+00> : vector<8x4xf32>
    %11 = vector.multi_reduction <add>, %10, %cst_7 [1] : vector<8x8x4xf32> to vector<8x4xf32>
    %12 = vector.shape_cast %11 : vector<8x4xf32> to vector<8x1x4xf32>
    %13 = vector.broadcast %12 : vector<8x1x4xf32> to vector<8x8x4xf32>
    %14 = arith.divf %10, %13 : vector<8x8x4xf32>
    %15 = vector.shape_cast %14 : vector<8x8x4xf32> to vector<64x4xf32>
    %c0_8 = arith.constant 0 : index
    %c0_9 = arith.constant 0 : index
    %16 = vector.load %arg4[%c0_8, %c0_9] : memref<4x32xf32, #tpu.memory_space<vmem>>, vector<4x32xf32>
    %cst_10 = arith.constant dense<0.000000e+00> : vector<64x32xf32>
    %17 = tpu.matmul %15, %16, %cst_10 {dimension_numbers = #tpu.dot_dimension_numbers<[1], [0], [0], [1], [0, 0, 1, 1], [], []>} : vector<64x4xf32>, vector<4x32xf32>, vector<64x32xf32> -> vector<64x32xf32>
    %18 = arith.mulf %17, %4 : vector<64x32xf32>
    %19 = vector.shape_cast %18 : vector<64x32xf32> to vector<8x8x32xf32>
    %cst_11 = arith.constant dense<0.000000e+00> : vector<8x32xf32>
    %20 = vector.multi_reduction <add>, %19, %cst_11 [1] : vector<8x8x32xf32> to vector<8x32xf32>
    %c0_12 = arith.constant 0 : index
    %c0_13 = arith.constant 0 : index
    %21 = vector.load %arg5[%c0_12, %c0_13] : memref<32x10xf32, #tpu.memory_space<vmem>>, vector<32x10xf32>
    %cst_14 = arith.constant dense<0.000000e+00> : vector<8x10xf32>
    %22 = tpu.matmul %20, %21, %cst_14 {dimension_numbers = #tpu.dot_dimension_numbers<[1], [0], [0], [1], [0, 0, 1, 1], [], []>} : vector<8x32xf32>, vector<32x10xf32>, vector<8x10xf32> -> vector<8x10xf32>
    %c0_15 = arith.constant 0 : index
    %c0_16 = arith.constant 0 : index
    %23 = vector.load %arg6[%c0_15, %c0_16] : memref<1x10xf32, #tpu.memory_space<vmem>>, vector<1x10xf32>
    %24 = vector.broadcast %23 : vector<1x10xf32> to vector<8x10xf32>
    %25 = arith.addf %22, %24 : vector<8x10xf32>
    %c0_17 = arith.constant 0 : index
    %c0_18 = arith.constant 0 : index
    %26 = vector.load %arg7[%c0_17, %c0_18] : memref<8x10xf32, #tpu.memory_space<vmem>>, vector<8x10xf32>
    tpu.vector_store %arg7[%c0_17, %c0_18], %25 {strides = array<i32>} : memref<8x10xf32, #tpu.memory_space<vmem>>, vector<8x10xf32>,
    return
  }
  func.func @transform_0(%arg0: i32) -> (i32, i32) {
    %c0_i32 = arith.constant 0 : i32
    %c0_i32_0 = arith.constant 0 : i32
    return %arg0, %c0_i32 : i32, i32
  }
  func.func @transform_1(%arg0: i32) -> (i32, i32) {
    %c0_i32 = arith.constant 0 : i32
    %c0_i32_0 = arith.constant 0 : i32
    %c0_i32_1 = arith.constant 0 : i32
    return %c0_i32, %c0_i32_0 : i32, i32
  }
  func.func @transform_2(%arg0: i32) -> (i32, i32) {
    %c0_i32 = arith.constant 0 : i32
    %c0_i32_0 = arith.constant 0 : i32
    %c0_i32_1 = arith.constant 0 : i32
    return %c0_i32, %c0_i32_0 : i32, i32
  }
  func.func @transform_3(%arg0: i32) -> (i32, i32) {
    %c0_i32 = arith.constant 0 : i32
    %c0_i32_0 = arith.constant 0 : i32
    %c0_i32_1 = arith.constant 0 : i32
    return %c0_i32, %c0_i32_0 : i32, i32
  }
  func.func @transform_4(%arg0: i32) -> (i32, i32) {
    %c0_i32 = arith.constant 0 : i32
    %c0_i32_0 = arith.constant 0 : i32
    %c0_i32_1 = arith.constant 0 : i32
    return %c0_i32, %c0_i32_0 : i32, i32
  }
  func.func @transform_5(%arg0: i32) -> (i32, i32) {
    %c0_i32 = arith.constant 0 : i32
    %c0_i32_0 = arith.constant 0 : i32
    %c0_i32_1 = arith.constant 0 : i32
    return %c0_i32, %c0_i32_0 : i32, i32
  }
  func.func @transform_6(%arg0: i32) -> (i32, i32) {
    %c0_i32 = arith.constant 0 : i32
    %c0_i32_0 = arith.constant 0 : i32
    return %arg0, %c0_i32 : i32, i32
  }
}

</mosaic_0001>

<llo_original>
// kernel: tpu_custom_call.1
$region0: #{tpu_custom_call.1}
  #allocation0 [shape = 'u32[]', space=smem, size = 0x4, offset = 0x4, fixed_abs, tag = 'smem constant byte address 0x4 - core index']
  #allocation1 [shape = 'u32[144,128]{1,0:T(1,128)}', space=vmem, size = 0x12000, scoped, tag = 'internal scratch']
  %s0 = inlined_call_operand.vmem [shape: f32[128,16], index: 0, kind: input, shape index: {}]
  %s1 = inlined_call_operand.vmem [shape: f32[16,4], index: 1, kind: input, shape index: {}]
  %s2 = inlined_call_operand.vmem [shape: f32[16,32], index: 2, kind: input, shape index: {}]
  %s3 = inlined_call_operand.vmem [shape: f32[4,32], index: 3, kind: input, shape index: {}]
  %s4 = inlined_call_operand.vmem [shape: f32[32,10], index: 4, kind: input, shape index: {}]
  %s5 = inlined_call_operand.vmem [shape: f32[1,10], index: 5, kind: input, shape index: {}]
  %s6 = inlined_call_operand.hbm [shape: f32[16,10], index: 6, kind: output, shape index: {}]
  %s7 = sld [smem:[#allocation0]]
  $region57: #{tpu_custom_call.1} parent=0
    _
  %s9 = ssub.s32 1, %s7
  %s10 = scalar_select 0, %s9, %s7
  $region1: #{tpu_custom_call.1} parent=0
    #allocation2 [shape = 'u8[8192]{0}', space=vmem, size = 0x2000, scoped, tag = 'output window, operand 0']
    #allocation3 [shape = 's32[2]{0}', space=sflag, size = 0x8, scoped, tag = 'scoped memory for tpu_custom_call.1']
    %11 = vsyncpa [#allocation3], 0
    %s12 = scalar_lea.sflag [#allocation3], 1
    %13 = vsyncpa %s12, 0
    loop: start=0, step=1, limit=4
    $region2: #{tpu_custom_call.1} parent=1 // loop_pre_header
      _
    $region3: #{tpu_custom_call.1} parent=1 // loop_header
      %s15 = sphi 0, %s19
      %p16 = scmp.ge.s32.totalorder %s15, 4
      %s25 = sphi 0, %s27
      %s28 = sphi 0, %s25
      %s29 = sphi 0, %s28
      %s45 = sphi 0, %s29
      %s49 = sphi 0, %s49
      %s51 = sphi 0, %s49
      %s52 = sphi 0, %s51
      %s66 = sphi 0, %s52
      %s70 = sphi 0, %s70
      %s72 = sphi 0, %s70
      %s73 = sphi 0, %s72
      %s87 = sphi 0, %s73
      %s91 = sphi 0, %s91
      %s93 = sphi 0, %s91
      %s94 = sphi 0, %s93
      %s108 = sphi 0, %s94
      %s112 = sphi 0, %s112
      %s114 = sphi 0, %s112
      %s115 = sphi 0, %s114
      %s129 = sphi 0, %s115
      %s133 = sphi 0, %s133
      %s135 = sphi 0, %s133
      %s136 = sphi 0, %s135
      %s150 = sphi 0, %s136
      %s156 = sphi 0, %s158
      %s159 = sphi 0, %s156
      %s160 = sphi 0, %s159
      %s176 = sphi 0, %s160
    $region4: #{tpu_custom_call.1} parent=1 // loop_header_branch
      %18 = sbr.rel (%p16) target = $region8
    $region5: #{tpu_custom_call.1} parent=1 // loop_body
      %s20 = ssub.s32 %s15, 1
      %s21 = ssub.s32 %s15, 2
      %s22 = sadd.s32 %s15, 1
      %s23 = ssub.s32 %s15, %s22
      %p24 = scmp.eq.s32.totalorder %s23, 0
      %s26 = sadd.s32 %s25, 1
      %s27 = scalar_select %p24, %s25, %s26
      %p30 = pneg %p24
      %p31 = scmp.eq.s32.totalorder %s15, 1
      %p32 = por %p30, %p31
      %p33 = scmp.ne.s32.totalorder %s25, %s28
      %p34 = scmp.eq.s32.totalorder %s15, 0
      %p35 = por %p33, %p34
      %p36 = scmp.ne.s32.totalorder %s25, %s28
      %p37 = scmp.eq.s32.totalorder %s20, 1
      %p38 = por %p36, %p37
      %p39 = scmp.ne.s32.totalorder %s28, %s29
      %p40 = scmp.eq.s32.totalorder %s20, 0
      %p41 = por %p39, %p40
      %p42 = scmp.ne.s32.totalorder %s28, %s29
      %p43 = scmp.eq.s32.totalorder %s21, 1
      %p44 = por %p42, %p43
      %p46 = scmp.ne.s32.totalorder %s29, %s45
      %p47 = scmp.eq.s32.totalorder %s21, 0
      %p48 = por %p46, %p47
      %s50 = sadd.s32 %s49, 1
      %p53 = scmp.eq.s32.totalorder %s15, 1
      %p54 = scmp.ne.s32.totalorder %s49, %s51
      %p55 = scmp.eq.s32.totalorder %s15, 0
      %p56 = por %p54, %p55
      %p57 = scmp.ne.s32.totalorder %s49, %s51
      %p58 = scmp.eq.s32.totalorder %s20, 1
      %p59 = por %p57, %p58
      %p60 = scmp.ne.s32.totalorder %s51, %s52
      %p61 = scmp.eq.s32.totalorder %s20, 0
      %p62 = por %p60, %p61
      %p63 = scmp.ne.s32.totalorder %s51, %s52
      %p64 = scmp.eq.s32.totalorder %s21, 1
      %p65 = por %p63, %p64
      %p67 = scmp.ne.s32.totalorder %s52, %s66
      %p68 = scmp.eq.s32.totalorder %s21, 0
      %p69 = por %p67, %p68
      %s71 = sadd.s32 %s70, 1
      %p74 = scmp.eq.s32.totalorder %s15, 1
      %p75 = scmp.ne.s32.totalorder %s70, %s72
      %p76 = scmp.eq.s32.totalorder %s15, 0
      %p77 = por %p75, %p76
      %p78 = scmp.ne.s32.totalorder %s70, %s72
      %p79 = scmp.eq.s32.totalorder %s20, 1
      %p80 = por %p78, %p79
      %p81 = scmp.ne.s32.totalorder %s72, %s73
      %p82 = scmp.eq.s32.totalorder %s20, 0
      %p83 = por %p81, %p82
      %p84 = scmp.ne.s32.totalorder %s72, %s73
      %p85 = scmp.eq.s32.totalorder %s21, 1
      %p86 = por %p84, %p85
      %p88 = scmp.ne.s32.totalorder %s73, %s87
      %p89 = scmp.eq.s32.totalorder %s21, 0
      %p90 = por %p88, %p89
      %s92 = sadd.s32 %s91, 1
      %p95 = scmp.eq.s32.totalorder %s15, 1
      %p96 = scmp.ne.s32.totalorder %s91, %s93
      %p97 = scmp.eq.s32.totalorder %s15, 0
      %p98 = por %p96, %p97
      %p99 = scmp.ne.s32.totalorder %s91, %s93
      %p100 = scmp.eq.s32.totalorder %s20, 1
      %p101 = por %p99, %p100
      %p102 = scmp.ne.s32.totalorder %s93, %s94
      %p103 = scmp.eq.s32.totalorder %s20, 0
      %p104 = por %p102, %p103
      %p105 = scmp.ne.s32.totalorder %s93, %s94
      %p106 = scmp.eq.s32.totalorder %s21, 1
      %p107 = por %p105, %p106
      %p109 = scmp.ne.s32.totalorder %s94, %s108
      %p110 = scmp.eq.s32.totalorder %s21, 0
      %p111 = por %p109, %p110
      %s113 = sadd.s32 %s112, 1
      %p116 = scmp.eq.s32.totalorder %s15, 1
      %p117 = scmp.ne.s32.totalorder %s112, %s114
      %p118 = scmp.eq.s32.totalorder %s15, 0
      %p119 = por %p117, %p118
      %p120 = scmp.ne.s32.totalorder %s112, %s114
      %p121 = scmp.eq.s32.totalorder %s20, 1
      %p122 = por %p120, %p121
      %p123 = scmp.ne.s32.totalorder %s114, %s115
      %p124 = scmp.eq.s32.totalorder %s20, 0
      %p125 = por %p123, %p124
      %p126 = scmp.ne.s32.totalorder %s114, %s115
      %p127 = scmp.eq.s32.totalorder %s21, 1
      %p128 = por %p126, %p127
      %p130 = scmp.ne.s32.totalorder %s115, %s129
      %p131 = scmp.eq.s32.totalorder %s21, 0
      %p132 = por %p130, %p131
      %s134 = sadd.s32 %s133, 1
      %p137 = scmp.eq.s32.totalorder %s15, 1
      %p138 = scmp.ne.s32.totalorder %s133, %s135
      %p139 = scmp.eq.s32.totalorder %s15, 0
      %p140 = por %p138, %p139
      %p141 = scmp.ne.s32.totalorder %s133, %s135
      %p142 = scmp.eq.s32.totalorder %s20, 1
      %p143 = por %p141, %p142
      %p144 = scmp.ne.s32.totalorder %s135, %s136
      %p145 = scmp.eq.s32.totalorder %s20, 0
      %p146 = por %p144, %p145
      %p147 = scmp.ne.s32.totalorder %s135, %s136
      %p148 = scmp.eq.s32.totalorder %s21, 1
      %p149 = por %p147, %p148
      %p151 = scmp.ne.s32.totalorder %s136, %s150
      %p152 = scmp.eq.s32.totalorder %s21, 0
      %p153 = por %p151, %p152
      %s154 = ssub.s32 %s15, %s22
      %p155 = scmp.eq.s32.totalorder %s154, 0
      %s157 = sadd.s32 %s156, 1
      %s158 = scalar_select %p155, %s156, %s157
      %p161 = pneg %p155
      %p162 = scmp.eq.s32.totalorder %s15, 1
      %p163 = por %p161, %p162
      %p164 = scmp.ne.s32.totalorder %s156, %s159
      %p165 = scmp.eq.s32.totalorder %s15, 0
      %p166 = por %p164, %p165
      %p167 = scmp.ne.s32.totalorder %s156, %s159
      %p168 = scmp.eq.s32.totalorder %s20, 1
      %p169 = por %p167, %p168
      %p170 = scmp.ne.s32.totalorder %s159, %s160
      %p171 = scmp.eq.s32.totalorder %s20, 0
      %p172 = por %p170, %p171
      %p173 = scmp.ne.s32.totalorder %s159, %s160
      %p174 = scmp.eq.s32.totalorder %s21, 1
      %p175 = por %p173, %p174
      %p177 = scmp.ne.s32.totalorder %s160, %s176
      %p178 = scmp.eq.s32.totalorder %s21, 0
      %p179 = por %p177, %p178
      %p180 = scmp.le.s32.totalorder 1, %s15
      %p181 = scmp.lt.s32.totalorder %s15, 3
      %p182 = pnand %p180, %p181
      %p183 = pneg %p182
      // Predicated region
      $region9: #{tpu_custom_call.1} parent=5 // pred_check
        _
      $region10: #{tpu_custom_call.1} parent=5 // pred_check_branch
        %185 = sbr.rel (%p182) target = $region12
      $region11: #{tpu_custom_call.1} parent=5 // pred_region
        %s186 = ssub.s32 %s15, 1
        // Predicated region
        $region13: #{tpu_custom_call.1} parent=11 // pred_check
          %p187 = pneg %p62
        $region14: #{tpu_custom_call.1} parent=11 // pred_check_branch
          %189 = sbr.rel (%p187) target = $region16
        $region15: #{tpu_custom_call.1} parent=11 // pred_region
          _
        $region16: #{tpu_custom_call.1} parent=11 // pred_fallthru
          _
        // Predicated region
        $region17: #{tpu_custom_call.1} parent=11 // pred_check
          %p190 = pneg %p83
        $region18: #{tpu_custom_call.1} parent=11 // pred_check_branch
          %192 = sbr.rel (%p190) target = $region20
        $region19: #{tpu_custom_call.1} parent=11 // pred_region
          _
        $region20: #{tpu_custom_call.1} parent=11 // pred_fallthru
          _
        // Predicated region
        $region21: #{tpu_custom_call.1} parent=11 // pred_check
          %p193 = pneg %p104
        $region22: #{tpu_custom_call.1} parent=11 // pred_check_branch
          %195 = sbr.rel (%p193) target = $region24
        $region23: #{tpu_custom_call.1} parent=11 // pred_region
          _
        $region24: #{tpu_custom_call.1} parent=11 // pred_fallthru
          _
        // Predicated region
        $region25: #{tpu_custom_call.1} parent=11 // pred_check
          %p196 = pneg %p125
        $region26: #{tpu_custom_call.1} parent=11 // pred_check_branch
          %198 = sbr.rel (%p196) target = $region28
        $region27: #{tpu_custom_call.1} parent=11 // pred_region
          _
        $region28: #{tpu_custom_call.1} parent=11 // pred_fallthru
          _
        // Predicated region
        $region29: #{tpu_custom_call.1} parent=11 // pred_check
          %p199 = pneg %p146
        $region30: #{tpu_custom_call.1} parent=11 // pred_check_branch
          %201 = sbr.rel (%p199) target = $region32
        $region31: #{tpu_custom_call.1} parent=11 // pred_region
          _
        $region32: #{tpu_custom_call.1} parent=11 // pred_fallthru
          _
      $region12: #{tpu_custom_call.1} parent=5 // pred_fallthru
        _
      %p202 = scmp.lt.s32.totalorder %s15, 2
      // Predicated region
      $region33: #{tpu_custom_call.1} parent=5 // pred_check
        %p203 = pneg %p202
      $region34: #{tpu_custom_call.1} parent=5 // pred_check_branch
        %205 = sbr.rel (%p203) target = $region36
      $region35: #{tpu_custom_call.1} parent=5 // pred_region
        // Predicated region
        $region37: #{tpu_custom_call.1} parent=35 // pred_check
          %p206 = pneg %p35
        $region38: #{tpu_custom_call.1} parent=35 // pred_check_branch
          %208 = sbr.rel (%p206) target = $region40
        $region39: #{tpu_custom_call.1} parent=35 // pred_region
          %s209 = smul.u32 8, %s15
          %p210 = scmp.lt.s32.totalorder %s209, 15
          %s211 = scalar_select %p210, %s209, 15
          %s212 = smul.addr %s211, 8
          %s213 = scalar_lea.vmem %s0, %s212
          %s214 = smul.u32 8, %s15
        $region40: #{tpu_custom_call.1} parent=35 // pred_fallthru
          _
      $region36: #{tpu_custom_call.1} parent=5 // pred_fallthru
        _
      %p215 = scmp.le.s32.totalorder 1, %s15
      %p216 = scmp.lt.s32.totalorder %s15, 3
      %p217 = pnand %p215, %p216
      %p218 = pneg %p217
      // Predicated region
      $region41: #{tpu_custom_call.1} parent=5 // pred_check
        _
      $region42: #{tpu_custom_call.1} parent=5 // pred_check_branch
        %220 = sbr.rel (%p217) target = $region44
      $region43: #{tpu_custom_call.1} parent=5 // pred_region
        %s221 = ssub.s32 %s15, 1
        %s222 = smul.u32 8, %s20
        %p223 = scmp.lt.s32.totalorder %s222, 15
        %s224 = scalar_select %p223, %s222, 15
        %s225 = smul.addr %s224, 8
        %s226 = scalar_lea.vmem %s0, %s225
        %p227 = pneg %p41
        %p228 = pneg %p38
        %p229 = pneg %p62
        %p230 = pneg %p59
        %p231 = pneg %p83
        %p232 = pneg %p80
        %p233 = pneg %p104
        %p234 = pneg %p101
        %p235 = pneg %p125
        %p236 = pneg %p122
        %p237 = pneg %p146
        %p238 = pneg %p143
        %p239 = pneg %p172
        %p240 = pneg %p169
        %s241 = sand.u32 %s159, 1
        %s242 = scalar_lea.sflag [#allocation3], %s241
        %s243 = sand.u32 %s159, 1
        %s244 = smul.addr %s243, 8
        %s245 = scalar_lea.vmem [#allocation2], %s244
        %s246 = smul.u32 8, %s20
        %p247 = scmp.lt.s32.totalorder %s246, 15
        %s248 = scalar_select %p247, %s246, 15
        %s249 = smul.addr %s248, 8
        %s250 = scalar_lea.vmem %s0, %s249
        %s251 = smul.u32 8, %s20
        %v252 = vld [vmem:[%s250] sm:$0xff]
        %v253 = vld [vmem:[%s250 + $0x8] sm:$0xff]
        %v254 = vld [vmem:[%s250 + $0x10] sm:$0xff]
        %v255 = vld [vmem:[%s250 + $0x18] sm:$0xff]
        %v256 = vld [vmem:[%s250 + $0x20] sm:$0xff]
        %v257 = vld [vmem:[%s250 + $0x28] sm:$0xff]
        %v258 = vld [vmem:[%s250 + $0x30] sm:$0xff]
        %v259 = vld [vmem:[%s250 + $0x38] sm:$0xff]
        %v260 = vld [vmem:[%s1] sm:$0xff]
        %v261 = vld [vmem:[%s1 + $0x8] sm:$0xff]
        %vm262 = vcmask 130048
        %v264 = vsel %vm262, %v252, 0
        %v267 = vsel %vm262, %v253, 0
        %v270 = vsel %vm262, %v254, 0
        %v273 = vsel %vm262, %v255, 0
        %v276 = vsel %vm262, %v256, 0
        %v279 = vsel %vm262, %v257, 0
        %v282 = vsel %vm262, %v258, 0
        %v285 = vsel %vm262, %v259, 0
        %287 = vmatprep.subr.mxu0 0.0
        %288 = vmatpush1.msra.mxu0 %v260
        %289 = vmatprep.subr.mxu0 0.0
        %290 = vmatpush1.msra.mxu0 %v261
        %291 = vmatprep.subr.mxu0 0.0
        %292 = vmatpush1.msra.mxu0 0.0
        %293 = vmatprep.subr.mxu0 0.0
        %294 = vmatpush1.msra.mxu0 0.0
        %295 = vmatprep.subr.mxu0 0.0
        %296 = vmatpush1.msra.mxu0 0.0
        %297 = vmatprep.subr.mxu0 0.0
        %298 = vmatpush1.msra.mxu0 0.0
        %299 = vmatprep.subr.mxu0 0.0
        %300 = vmatpush1.msra.mxu0 0.0
        %301 = vmatprep.subr.mxu0 0.0
        %302 = vmatpush1.msra.mxu0 0.0
        %303 = vmatprep.subr.mxu0 0.0
        %304 = vmatpush1.msra.mxu0 0.0
        %305 = vmatprep.subr.mxu0 0.0
        %306 = vmatpush1.msra.mxu0 0.0
        %307 = vmatprep.subr.mxu0 0.0
        %308 = vmatpush1.msra.mxu0 0.0
        %309 = vmatprep.subr.mxu0 0.0
        %310 = vmatpush1.msra.mxu0 0.0
        %311 = vmatprep.subr.mxu0 0.0
        %312 = vmatpush1.msra.mxu0 0.0
        %313 = vmatprep.subr.mxu0 0.0
        %314 = vmatpush1.msra.mxu0 0.0
        %315 = vmatprep.subr.mxu0 0.0
        %316 = vmatpush1.msra.mxu0 0.0
        %317 = vmatprep.subr.mxu0 0.0
        %318 = vmatpush1.msra.mxu0 0.0
        %319 = vmatprep.subr.mxu0 0.0
        %320 = vmatpush1.msra.mxu0 0.0
        %321 = vmatprep.subr.mxu0 0.0
        %322 = vmatpush1.msra.mxu0 0.0
        %323 = vmatprep.subr.mxu0 0.0
        %324 = vmatpush1.msra.mxu0 0.0
        %325 = vmatprep.subr.mxu0 0.0
        %326 = vmatpush1.msra.mxu0 0.0
        %327 = vmatprep.subr.mxu0 0.0
        %328 = vmatpush1.msra.mxu0 0.0
        %329 = vmatprep.subr.mxu0 0.0
        %330 = vmatpush1.msra.mxu0 0.0
        %331 = vmatprep.subr.mxu0 0.0
        %332 = vmatpush1.msra.mxu0 0.0
        %333 = vmatprep.subr.mxu0 0.0
        %334 = vmatpush1.msra.mxu0 0.0
        %335 = vmatprep.subr.mxu0 0.0
        %336 = vmatpush1.msra.mxu0 0.0
        %337 = vmatprep.subr.mxu0 0.0
        %338 = vmatpush1.msra.mxu0 0.0
        %339 = vmatprep.subr.mxu0 0.0
        %340 = vmatpush1.msra.mxu0 0.0
        %341 = vmatprep.subr.mxu0 0.0
        %342 = vmatpush1.msra.mxu0 0.0
        %343 = vmatprep.subr.mxu0 0.0
        %344 = vmatpush1.msra.mxu0 0.0
        %345 = vmatprep.subr.mxu0 0.0
        %346 = vmatpush1.msra.mxu0 0.0
        %347 = vmatprep.subr.mxu0 0.0
        %348 = vmatpush1.msra.mxu0 0.0
        %349 = vmatprep.subr.mxu0 0.0
        %350 = vmatpush1.msra.mxu0 0.0
        %351 = vmatprep.mubr.f32.mxu0 0.0
        %352 = vmatmul.mubr.f32.gmra.mrb[0].mxu0 %v264
        %v353 = vpop.f32.mrb[0].mxu0
        %v354 = vadd.f32 0.0, %v353
        %v355 = vpop.f32.mrb[0].mxu0
        %356 = vmatprep.mubr.f32.mxu0 0.0
        %357 = vmatmul.mubr.f32.gmra.mrb[0].mxu0 %v267
        %v358 = vpop.f32.mrb[0].mxu0
        %v359 = vadd.f32 0.0, %v358
        %v360 = vpop.f32.mrb[0].mxu0
        %361 = vmatprep.mubr.f32.mxu0 0.0
        %362 = vmatmul.mubr.f32.gmra.mrb[0].mxu0 %v270
        %v363 = vpop.f32.mrb[0].mxu0
        %v364 = vadd.f32 0.0, %v363
        %v365 = vpop.f32.mrb[0].mxu0
        %366 = vmatprep.mubr.f32.mxu0 0.0
        %367 = vmatmul.mubr.f32.gmra.mrb[0].mxu0 %v273
        %v368 = vpop.f32.mrb[0].mxu0
        %v369 = vadd.f32 0.0, %v368
        %v370 = vpop.f32.mrb[0].mxu0
        %371 = vmatprep.mubr.f32.mxu0 0.0
        %372 = vmatmul.mubr.f32.gmra.mrb[0].mxu0 %v276
        %v373 = vpop.f32.mrb[0].mxu0
        %v374 = vadd.f32 0.0, %v373
        %v375 = vpop.f32.mrb[0].mxu0
        %376 = vmatprep.mubr.f32.mxu0 0.0
        %377 = vmatmul.mubr.f32.gmra.mrb[0].mxu0 %v279
        %v378 = vpop.f32.mrb[0].mxu0
        %v379 = vadd.f32 0.0, %v378
        %v380 = vpop.f32.mrb[0].mxu0
        %381 = vmatprep.mubr.f32.mxu0 0.0
        %382 = vmatmul.mubr.f32.gmra.mrb[0].mxu0 %v282
        %v383 = vpop.f32.mrb[0].mxu0
        %v384 = vadd.f32 0.0, %v383
        %v385 = vpop.f32.mrb[0].mxu0
        %386 = vmatprep.mubr.f32.mxu0 0.0
        %387 = vmatmul.mubr.f32.gmra.mrb[0].mxu0 %v285
        %v388 = vpop.f32.mrb[0].mxu0
        %v389 = vadd.f32 0.0, %v388
        %v390 = vpop.f32.mrb[0].mxu0
        %391 = vdwg.mxu0
        %v392 = vld [vmem:[%s2] sm:$0xff]
        %v393 = vld [vmem:[%s2 + $0x8] sm:$0xff]
        %394 = vmatprep.subr.mxu0 0.0
        %395 = vmatpush1.msra.mxu0 %v392
        %396 = vmatprep.subr.mxu0 0.0
        %397 = vmatpush1.msra.mxu0 %v393
        %398 = vmatprep.subr.mxu0 0.0
        %399 = vmatpush1.msra.mxu0 0.0
        %400 = vmatprep.subr.mxu0 0.0
        %401 = vmatpush1.msra.mxu0 0.0
        %402 = vmatprep.subr.mxu0 0.0
        %403 = vmatpush1.msra.mxu0 0.0
        %404 = vmatprep.subr.mxu0 0.0
        %405 = vmatpush1.msra.mxu0 0.0
        %406 = vmatprep.subr.mxu0 0.0
        %407 = vmatpush1.msra.mxu0 0.0
        %408 = vmatprep.subr.mxu0 0.0
        %409 = vmatpush1.msra.mxu0 0.0
        %410 = vmatprep.subr.mxu0 0.0
        %411 = vmatpush1.msra.mxu0 0.0
        %412 = vmatprep.subr.mxu0 0.0
        %413 = vmatpush1.msra.mxu0 0.0
        %414 = vmatprep.subr.mxu0 0.0
        %415 = vmatpush1.msra.mxu0 0.0
        %416 = vmatprep.subr.mxu0 0.0
        %417 = vmatpush1.msra.mxu0 0.0
        %418 = vmatprep.subr.mxu0 0.0
        %419 = vmatpush1.msra.mxu0 0.0
        %420 = vmatprep.subr.mxu0 0.0
        %421 = vmatpush1.msra.mxu0 0.0
        %422 = vmatprep.subr.mxu0 0.0
        %423 = vmatpush1.msra.mxu0 0.0
        %424 = vmatprep.subr.mxu0 0.0
        %425 = vmatpush1.msra.mxu0 0.0
        %426 = vmatprep.subr.mxu0 0.0
        %427 = vmatpush1.msra.mxu0 0.0
        %428 = vmatprep.subr.mxu0 0.0
        %429 = vmatpush1.msra.mxu0 0.0
        %430 = vmatprep.subr.mxu0 0.0
        %431 = vmatpush1.msra.mxu0 0.0
        %432 = vmatprep.subr.mxu0 0.0
        %433 = vmatpush1.msra.mxu0 0.0
        %434 = vmatprep.subr.mxu0 0.0
        %435 = vmatpush1.msra.mxu0 0.0
        %436 = vmatprep.subr.mxu0 0.0
        %437 = vmatpush1.msra.mxu0 0.0
        %438 = vmatprep.subr.mxu0 0.0
        %439 = vmatpush1.msra.mxu0 0.0
        %440 = vmatprep.subr.mxu0 0.0
        %441 = vmatpush1.msra.mxu0 0.0
        %442 = vmatprep.subr.mxu0 0.0
        %443 = vmatpush1.msra.mxu0 0.0
        %444 = vmatprep.subr.mxu0 0.0
        %445 = vmatpush1.msra.mxu0 0.0
        %446 = vmatprep.subr.mxu0 0.0
        %447 = vmatpush1.msra.mxu0 0.0
        %448 = vmatprep.subr.mxu0 0.0
        %449 = vmatpush1.msra.mxu0 0.0
        %450 = vmatprep.subr.mxu0 0.0
        %451 = vmatpush1.msra.mxu0 0.0
        %452 = vmatprep.subr.mxu0 0.0
        %453 = vmatpush1.msra.mxu0 0.0
        %454 = vmatprep.subr.mxu0 0.0
        %455 = vmatpush1.msra.mxu0 0.0
        %456 = vmatprep.subr.mxu0 0.0
        %457 = vmatpush1.msra.mxu0 0.0
        %458 = vmatprep.mubr.f32.mxu0 0.0
        %459 = vmatmul.mubr.f32.gmra.mrb[0].mxu0 %v264
        %v460 = vpop.f32.mrb[0].mxu0
        %v461 = vadd.f32 0.0, %v460
        %v462 = vpop.f32.mrb[0].mxu0
        %463 = vmatprep.mubr.f32.mxu0 0.0
        %464 = vmatmul.mubr.f32.gmra.mrb[0].mxu0 %v267
        %v465 = vpop.f32.mrb[0].mxu0
        %v466 = vadd.f32 0.0, %v465
        %v467 = vpop.f32.mrb[0].mxu0
        %468 = vmatprep.mubr.f32.mxu0 0.0
        %469 = vmatmul.mubr.f32.gmra.mrb[0].mxu0 %v270
        %v470 = vpop.f32.mrb[0].mxu0
        %v471 = vadd.f32 0.0, %v470
        %v472 = vpop.f32.mrb[0].mxu0
        %473 = vmatprep.mubr.f32.mxu0 0.0
        %474 = vmatmul.mubr.f32.gmra.mrb[0].mxu0 %v273
        %v475 = vpop.f32.mrb[0].mxu0
        %v476 = vadd.f32 0.0, %v475
        %v477 = vpop.f32.mrb[0].mxu0
        %478 = vmatprep.mubr.f32.mxu0 0.0
        %479 = vmatmul.mubr.f32.gmra.mrb[0].mxu0 %v276
        %v480 = vpop.f32.mrb[0].mxu0
        %v481 = vadd.f32 0.0, %v480
        %v482 = vpop.f32.mrb[0].mxu0
        %483 = vmatprep.mubr.f32.mxu0 0.0
        %484 = vmatmul.mubr.f32.gmra.mrb[0].mxu0 %v279
        %v485 = vpop.f32.mrb[0].mxu0
        %v486 = vadd.f32 0.0, %v485
        %v487 = vpop.f32.mrb[0].mxu0
        %488 = vmatprep.mubr.f32.mxu0 0.0
        %489 = vmatmul.mubr.f32.gmra.mrb[0].mxu0 %v282
        %v490 = vpop.f32.mrb[0].mxu0
        %v491 = vadd.f32 0.0, %v490
        %v492 = vpop.f32.mrb[0].mxu0
        %493 = vmatprep.mubr.f32.mxu0 0.0
        %494 = vmatmul.mubr.f32.gmra.mrb[0].mxu0 %v285
        %v495 = vpop.f32.mrb[0].mxu0
        %v496 = vadd.f32 0.0, %v495
        %v497 = vpop.f32.mrb[0].mxu0
        %498 = vdwg.mxu0
        %vm499 = vcmask 31744
        %v500 = vsel %vm499, %v354, -inf
        %v501 = vrot.slane %v500, 4
        %v502 = vmax.f32 %v500, %v501
        %v503 = vrot.slane %v502, 2
        %v504 = vmax.f32 %v502, %v503
        %v505 = vrot.slane %v504, 1
        %v506 = vmax.f32 %v504, %v505
        %v507 = vsel %vm499, %v359, -inf
        %v508 = vrot.slane %v507, 4
        %v509 = vmax.f32 %v507, %v508
        %v510 = vrot.slane %v509, 2
        %v511 = vmax.f32 %v509, %v510
        %v512 = vrot.slane %v511, 1
        %v513 = vmax.f32 %v511, %v512
        %v514 = vsel %vm499, %v364, -inf
        %v515 = vrot.slane %v514, 4
        %v516 = vmax.f32 %v514, %v515
        %v517 = vrot.slane %v516, 2
        %v518 = vmax.f32 %v516, %v517
        %v519 = vrot.slane %v518, 1
        %v520 = vmax.f32 %v518, %v519
        %v521 = vsel %vm499, %v369, -inf
        %v522 = vrot.slane %v521, 4
        %v523 = vmax.f32 %v521, %v522
        %v524 = vrot.slane %v523, 2
        %v525 = vmax.f32 %v523, %v524
        %v526 = vrot.slane %v525, 1
        %v527 = vmax.f32 %v525, %v526
        %v528 = vsel %vm499, %v374, -inf
        %v529 = vrot.slane %v528, 4
        %v530 = vmax.f32 %v528, %v529
        %v531 = vrot.slane %v530, 2
        %v532 = vmax.f32 %v530, %v531
        %v533 = vrot.slane %v532, 1
        %v534 = vmax.f32 %v532, %v533
        %v535 = vsel %vm499, %v379, -inf
        %v536 = vrot.slane %v535, 4
        %v537 = vmax.f32 %v535, %v536
        %v538 = vrot.slane %v537, 2
        %v539 = vmax.f32 %v537, %v538
        %v540 = vrot.slane %v539, 1
        %v541 = vmax.f32 %v539, %v540
        %v542 = vsel %vm499, %v384, -inf
        %v543 = vrot.slane %v542, 4
        %v544 = vmax.f32 %v542, %v543
        %v545 = vrot.slane %v544, 2
        %v546 = vmax.f32 %v544, %v545
        %v547 = vrot.slane %v546, 1
        %v548 = vmax.f32 %v546, %v547
        %v549 = vsel %vm499, %v389, -inf
        %v550 = vrot.slane %v549, 4
        %v551 = vmax.f32 %v549, %v550
        %v552 = vrot.slane %v551, 2
        %v553 = vmax.f32 %v551, %v552
        %v554 = vrot.slane %v553, 1
        %v555 = vmax.f32 %v553, %v554
        %v556 = vsub.f32 %v354, %v506
        %v557 = vsub.f32 %v359, %v513
        %v558 = vsub.f32 %v364, %v520
        %v559 = vsub.f32 %v369, %v527
        %v560 = vsub.f32 %v374, %v534
        %v561 = vsub.f32 %v379, %v541
        %v562 = vsub.f32 %v384, %v548
        %v563 = vsub.f32 %v389, %v555
        %v564 = vmul.f32 %v556, 1.442695
        %v565 = vpow.pop %v564
        %v566 = vmul.f32 %v557, 1.442695
        %v567 = vpow.pop %v566
        %v568 = vmul.f32 %v558, 1.442695
        %v569 = vpow.pop %v568
        %v570 = vmul.f32 %v559, 1.442695
        %v571 = vpow.pop %v570
        %v572 = vmul.f32 %v560, 1.442695
        %v573 = vpow.pop %v572
        %v574 = vmul.f32 %v561, 1.442695
        %v575 = vpow.pop %v574
        %v576 = vmul.f32 %v562, 1.442695
        %v577 = vpow.pop %v576
        %v578 = vmul.f32 %v563, 1.442695
        %v579 = vpow.pop %v578
        %v580 = vsel %vm499, %v565, 0.0
        %v581 = vrot.slane %v580, 4
        %v582 = vadd.f32 %v580, %v581
        %v583 = vrot.slane %v582, 2
        %v584 = vadd.f32 %v582, %v583
        %v585 = vrot.slane %v584, 1
        %v586 = vadd.f32 %v584, %v585
        %v587 = vsel %vm499, %v567, 0.0
        %v588 = vrot.slane %v587, 4
        %v589 = vadd.f32 %v587, %v588
        %v590 = vrot.slane %v589, 2
        %v591 = vadd.f32 %v589, %v590
        %v592 = vrot.slane %v591, 1
        %v593 = vadd.f32 %v591, %v592
        %v594 = vsel %vm499, %v569, 0.0
        %v595 = vrot.slane %v594, 4
        %v596 = vadd.f32 %v594, %v595
        %v597 = vrot.slane %v596, 2
        %v598 = vadd.f32 %v596, %v597
        %v599 = vrot.slane %v598, 1
        %v600 = vadd.f32 %v598, %v599
        %v601 = vsel %vm499, %v571, 0.0
        %v602 = vrot.slane %v601, 4
        %v603 = vadd.f32 %v601, %v602
        %v604 = vrot.slane %v603, 2
        %v605 = vadd.f32 %v603, %v604
        %v606 = vrot.slane %v605, 1
        %v607 = vadd.f32 %v605, %v606
        %v608 = vsel %vm499, %v573, 0.0
        %v609 = vrot.slane %v608, 4
        %v610 = vadd.f32 %v608, %v609
        %v611 = vrot.slane %v610, 2
        %v612 = vadd.f32 %v610, %v611
        %v613 = vrot.slane %v612, 1
        %v614 = vadd.f32 %v612, %v613
        %v615 = vsel %vm499, %v575, 0.0
        %v616 = vrot.slane %v615, 4
        %v617 = vadd.f32 %v615, %v616
        %v618 = vrot.slane %v617, 2
        %v619 = vadd.f32 %v617, %v618
        %v620 = vrot.slane %v619, 1
        %v621 = vadd.f32 %v619, %v620
        %v622 = vsel %vm499, %v577, 0.0
        %v623 = vrot.slane %v622, 4
        %v624 = vadd.f32 %v622, %v623
        %v625 = vrot.slane %v624, 2
        %v626 = vadd.f32 %v624, %v625
        %v627 = vrot.slane %v626, 1
        %v628 = vadd.f32 %v626, %v627
        %v629 = vsel %vm499, %v579, 0.0
        %v630 = vrot.slane %v629, 4
        %v631 = vadd.f32 %v629, %v630
        %v632 = vrot.slane %v631, 2
        %v633 = vadd.f32 %v631, %v632
        %v634 = vrot.slane %v633, 1
        %v635 = vadd.f32 %v633, %v634
        %v636 = vrcp.pop %v586
        %v637 = vmul.f32 %v565, %v636
        %v638 = vrcp.pop %v593
        %v639 = vmul.f32 %v567, %v638
        %v640 = vrcp.pop %v600
        %v641 = vmul.f32 %v569, %v640
        %v642 = vrcp.pop %v607
        %v643 = vmul.f32 %v571, %v642
        %v644 = vrcp.pop %v614
        %v645 = vmul.f32 %v573, %v644
        %v646 = vrcp.pop %v621
        %v647 = vmul.f32 %v575, %v646
        %v648 = vrcp.pop %v628
        %v649 = vmul.f32 %v577, %v648
        %v650 = vrcp.pop %v635
        %v651 = vmul.f32 %v579, %v650
        %v652 = vld [vmem:[%s3] sm:$0xf]
        %v654 = vsel %vm499, %v637, 0
        %v657 = vsel %vm499, %v639, 0
        %v660 = vsel %vm499, %v641, 0
        %v663 = vsel %vm499, %v643, 0
        %v666 = vsel %vm499, %v645, 0
        %v669 = vsel %vm499, %v647, 0
        %v672 = vsel %vm499, %v649, 0
        %v675 = vsel %vm499, %v651, 0
        %vm677 = vcmask 1043456
        %v679 = vsel %vm677, %v652, 0
        %681 = vmatprep.subr.mxu0 0.0
        %682 = vmatpush1.msra.mxu0 %v679
        %683 = vmatprep.subr.mxu0 0.0
        %684 = vmatpush1.msra.mxu0 0.0
        %685 = vmatprep.subr.mxu0 0.0
        %686 = vmatpush1.msra.mxu0 0.0
        %687 = vmatprep.subr.mxu0 0.0
        %688 = vmatpush1.msra.mxu0 0.0
        %689 = vmatprep.subr.mxu0 0.0
        %690 = vmatpush1.msra.mxu0 0.0
        %691 = vmatprep.subr.mxu0 0.0
        %692 = vmatpush1.msra.mxu0 0.0
        %693 = vmatprep.subr.mxu0 0.0
        %694 = vmatpush1.msra.mxu0 0.0
        %695 = vmatprep.subr.mxu0 0.0
        %696 = vmatpush1.msra.mxu0 0.0
        %697 = vmatprep.subr.mxu0 0.0
        %698 = vmatpush1.msra.mxu0 0.0
        %699 = vmatprep.subr.mxu0 0.0
        %700 = vmatpush1.msra.mxu0 0.0
        %701 = vmatprep.subr.mxu0 0.0
        %702 = vmatpush1.msra.mxu0 0.0
        %703 = vmatprep.subr.mxu0 0.0
        %704 = vmatpush1.msra.mxu0 0.0
        %705 = vmatprep.subr.mxu0 0.0
        %706 = vmatpush1.msra.mxu0 0.0
        %707 = vmatprep.subr.mxu0 0.0
        %708 = vmatpush1.msra.mxu0 0.0
        %709 = vmatprep.subr.mxu0 0.0
        %710 = vmatpush1.msra.mxu0 0.0
        %711 = vmatprep.subr.mxu0 0.0
        %712 = vmatpush1.msra.mxu0 0.0
        %713 = vmatprep.subr.mxu0 0.0
        %714 = vmatpush1.msra.mxu0 0.0
        %715 = vmatprep.subr.mxu0 0.0
        %716 = vmatpush1.msra.mxu0 0.0
        %717 = vmatprep.subr.mxu0 0.0
        %718 = vmatpush1.msra.mxu0 0.0
        %719 = vmatprep.subr.mxu0 0.0
        %720 = vmatpush1.msra.mxu0 0.0
        %721 = vmatprep.subr.mxu0 0.0
        %722 = vmatpush1.msra.mxu0 0.0
        %723 = vmatprep.subr.mxu0 0.0
        %724 = vmatpush1.msra.mxu0 0.0
        %725 = vmatprep.subr.mxu0 0.0
        %726 = vmatpush1.msra.mxu0 0.0
        %727 = vmatprep.subr.mxu0 0.0
        %728 = vmatpush1.msra.mxu0 0.0
        %729 = vmatprep.subr.mxu0 0.0
        %730 = vmatpush1.msra.mxu0 0.0
        %731 = vmatprep.subr.mxu0 0.0
        %732 = vmatpush1.msra.mxu0 0.0
        %733 = vmatprep.subr.mxu0 0.0
        %734 = vmatpush1.msra.mxu0 0.0
        %735 = vmatprep.subr.mxu0 0.0
        %736 = vmatpush1.msra.mxu0 0.0
        %737 = vmatprep.subr.mxu0 0.0
        %738 = vmatpush1.msra.mxu0 0.0
        %739 = vmatprep.subr.mxu0 0.0
        %740 = vmatpush1.msra.mxu0 0.0
        %741 = vmatprep.subr.mxu0 0.0
        %742 = vmatpush1.msra.mxu0 0.0
        %743 = vmatprep.subr.mxu0 0.0
        %744 = vmatpush1.msra.mxu0 0.0
        %745 = vmatprep.mubr.f32.mxu0 0.0
        %746 = vmatmul.mubr.f32.gmra.mrb[0].mxu0 %v654
        %v747 = vpop.f32.mrb[0].mxu0
        %v748 = vadd.f32 0.0, %v747
        %v749 = vpop.f32.mrb[0].mxu0
        %750 = vmatprep.mubr.f32.mxu0 0.0
        %751 = vmatmul.mubr.f32.gmra.mrb[0].mxu0 %v657
        %v752 = vpop.f32.mrb[0].mxu0
        %v753 = vadd.f32 0.0, %v752
        %v754 = vpop.f32.mrb[0].mxu0
        %755 = vmatprep.mubr.f32.mxu0 0.0
        %756 = vmatmul.mubr.f32.gmra.mrb[0].mxu0 %v660
        %v757 = vpop.f32.mrb[0].mxu0
        %v758 = vadd.f32 0.0, %v757
        %v759 = vpop.f32.mrb[0].mxu0
        %760 = vmatprep.mubr.f32.mxu0 0.0
        %761 = vmatmul.mubr.f32.gmra.mrb[0].mxu0 %v663
        %v762 = vpop.f32.mrb[0].mxu0
        %v763 = vadd.f32 0.0, %v762
        %v764 = vpop.f32.mrb[0].mxu0
        %765 = vmatprep.mubr.f32.mxu0 0.0
        %766 = vmatmul.mubr.f32.gmra.mrb[0].mxu0 %v666
        %v767 = vpop.f32.mrb[0].mxu0
        %v768 = vadd.f32 0.0, %v767
        %v769 = vpop.f32.mrb[0].mxu0
        %770 = vmatprep.mubr.f32.mxu0 0.0
        %771 = vmatmul.mubr.f32.gmra.mrb[0].mxu0 %v669
        %v772 = vpop.f32.mrb[0].mxu0
        %v773 = vadd.f32 0.0, %v772
        %v774 = vpop.f32.mrb[0].mxu0
        %775 = vmatprep.mubr.f32.mxu0 0.0
        %776 = vmatmul.mubr.f32.gmra.mrb[0].mxu0 %v672
        %v777 = vpop.f32.mrb[0].mxu0
        %v778 = vadd.f32 0.0, %v777
        %v779 = vpop.f32.mrb[0].mxu0
        %780 = vmatprep.mubr.f32.mxu0 0.0
        %781 = vmatmul.mubr.f32.gmra.mrb[0].mxu0 %v675
        %v782 = vpop.f32.mrb[0].mxu0
        %v783 = vadd.f32 0.0, %v782
        %v784 = vpop.f32.mrb[0].mxu0
        %785 = vdwg.mxu0
        %v786 = vmul.f32 %v748, %v461
        %v787 = vmul.f32 %v753, %v466
        %v788 = vmul.f32 %v758, %v471
        %v789 = vmul.f32 %v763, %v476
        %v790 = vmul.f32 %v768, %v481
        %v791 = vmul.f32 %v773, %v486
        %v792 = vmul.f32 %v778, %v491
        %v793 = vmul.f32 %v783, %v496
        %vm794 = vcmask 261120
        %v795 = vsel %vm794, %v786, 0.0
        %v796 = vrot.slane %v795, 4
        %v797 = vadd.f32 %v795, %v796
        %v798 = vrot.slane %v797, 2
        %v799 = vadd.f32 %v797, %v798
        %v800 = vrot.slane %v799, 1
        %v801 = vadd.f32 %v799, %v800
        %v802 = vsel %vm794, %v787, 0.0
        %v803 = vrot.slane %v802, 4
        %v804 = vadd.f32 %v802, %v803
        %v805 = vrot.slane %v804, 2
        %v806 = vadd.f32 %v804, %v805
        %v807 = vrot.slane %v806, 1
        %v808 = vadd.f32 %v806, %v807
        %v809 = vsel %vm794, %v788, 0.0
        %v810 = vrot.slane %v809, 4
        %v811 = vadd.f32 %v809, %v810
        %v812 = vrot.slane %v811, 2
        %v813 = vadd.f32 %v811, %v812
        %v814 = vrot.slane %v813, 1
        %v815 = vadd.f32 %v813, %v814
        %v816 = vsel %vm794, %v789, 0.0
        %v817 = vrot.slane %v816, 4
        %v818 = vadd.f32 %v816, %v817
        %v819 = vrot.slane %v818, 2
        %v820 = vadd.f32 %v818, %v819
        %v821 = vrot.slane %v820, 1
        %v822 = vadd.f32 %v820, %v821
        %v823 = vsel %vm794, %v790, 0.0
        %v824 = vrot.slane %v823, 4
        %v825 = vadd.f32 %v823, %v824
        %v826 = vrot.slane %v825, 2
        %v827 = vadd.f32 %v825, %v826
        %v828 = vrot.slane %v827, 1
        %v829 = vadd.f32 %v827, %v828
        %v830 = vsel %vm794, %v791, 0.0
        %v831 = vrot.slane %v830, 4
        %v832 = vadd.f32 %v830, %v831
        %v833 = vrot.slane %v832, 2
        %v834 = vadd.f32 %v832, %v833
        %v835 = vrot.slane %v834, 1
        %v836 = vadd.f32 %v834, %v835
        %v837 = vsel %vm794, %v792, 0.0
        %v838 = vrot.slane %v837, 4
        %v839 = vadd.f32 %v837, %v838
        %v840 = vrot.slane %v839, 2
        %v841 = vadd.f32 %v839, %v840
        %v842 = vrot.slane %v841, 1
        %v843 = vadd.f32 %v841, %v842
        %v844 = vsel %vm794, %v793, 0.0
        %v845 = vrot.slane %v844, 4
        %v846 = vadd.f32 %v844, %v845
        %v847 = vrot.slane %v846, 2
        %v848 = vadd.f32 %v846, %v847
        %v849 = vrot.slane %v848, 1
        %v850 = vadd.f32 %v848, %v849
        %v851 = vld [vmem:[%s4] sm:$0xff]
        %v852 = vld [vmem:[%s4 + $0x8] sm:$0xff]
        %v853 = vld [vmem:[%s4 + $0x10] sm:$0xff]
        %v854 = vld [vmem:[%s4 + $0x18] sm:$0xff]
        %v855 = vld [vmem:[%s5] sm:$0x1]
        %v857 = vlaneseq
        %v858 = vshrl.u32 %v857, 7
        %v859 = vsub.s32 0, %v858
        %v860 = vrot.slane %v855, %v859
        %vm870 = vcmask 1041409
        %v871 = vsel %vm870, %v808, %v801
        %vm872 = vcmask 1042434
        %v873 = vsel %vm872, %v815, %v871
        %vm874 = vcmask 1043459
        %v875 = vsel %vm874, %v822, %v873
        %vm876 = vcmask 1044484
        %v877 = vsel %vm876, %v829, %v875
        %vm878 = vcmask 1045509
        %v879 = vsel %vm878, %v836, %v877
        %vm880 = vcmask 1046534
        %v881 = vsel %vm880, %v843, %v879
        %vm882 = vcmask 1047559
        %v883 = vsel %vm882, %v850, %v881
        %v884 = vsel %vm794, %v883, 0
        %886 = vmatprep.subr.mxu0 0.0
        %887 = vmatpush1.msra.mxu0 %v851
        %888 = vmatprep.subr.mxu0 0.0
        %889 = vmatpush1.msra.mxu0 %v852
        %890 = vmatprep.subr.mxu0 0.0
        %891 = vmatpush1.msra.mxu0 %v853
        %892 = vmatprep.subr.mxu0 0.0
        %893 = vmatpush1.msra.mxu0 %v854
        %894 = vmatprep.subr.mxu0 0.0
        %895 = vmatpush1.msra.mxu0 0.0
        %896 = vmatprep.subr.mxu0 0.0
        %897 = vmatpush1.msra.mxu0 0.0
        %898 = vmatprep.subr.mxu0 0.0
        %899 = vmatpush1.msra.mxu0 0.0
        %900 = vmatprep.subr.mxu0 0.0
        %901 = vmatpush1.msra.mxu0 0.0
        %902 = vmatprep.subr.mxu0 0.0
        %903 = vmatpush1.msra.mxu0 0.0
        %904 = vmatprep.subr.mxu0 0.0
        %905 = vmatpush1.msra.mxu0 0.0
        %906 = vmatprep.subr.mxu0 0.0
        %907 = vmatpush1.msra.mxu0 0.0
        %908 = vmatprep.subr.mxu0 0.0
        %909 = vmatpush1.msra.mxu0 0.0
        %910 = vmatprep.subr.mxu0 0.0
        %911 = vmatpush1.msra.mxu0 0.0
        %912 = vmatprep.subr.mxu0 0.0
        %913 = vmatpush1.msra.mxu0 0.0
        %914 = vmatprep.subr.mxu0 0.0
        %915 = vmatpush1.msra.mxu0 0.0
        %916 = vmatprep.subr.mxu0 0.0
        %917 = vmatpush1.msra.mxu0 0.0
        %918 = vmatprep.subr.mxu0 0.0
        %919 = vmatpush1.msra.mxu0 0.0
        %920 = vmatprep.subr.mxu0 0.0
        %921 = vmatpush1.msra.mxu0 0.0
        %922 = vmatprep.subr.mxu0 0.0
        %923 = vmatpush1.msra.mxu0 0.0
        %924 = vmatprep.subr.mxu0 0.0
        %925 = vmatpush1.msra.mxu0 0.0
        %926 = vmatprep.subr.mxu0 0.0
        %927 = vmatpush1.msra.mxu0 0.0
        %928 = vmatprep.subr.mxu0 0.0
        %929 = vmatpush1.msra.mxu0 0.0
        %930 = vmatprep.subr.mxu0 0.0
        %931 = vmatpush1.msra.mxu0 0.0
        %932 = vmatprep.subr.mxu0 0.0
        %933 = vmatpush1.msra.mxu0 0.0
        %934 = vmatprep.subr.mxu0 0.0
        %935 = vmatpush1.msra.mxu0 0.0
        %936 = vmatprep.subr.mxu0 0.0
        %937 = vmatpush1.msra.mxu0 0.0
        %938 = vmatprep.subr.mxu0 0.0
        %939 = vmatpush1.msra.mxu0 0.0
        %940 = vmatprep.subr.mxu0 0.0
        %941 = vmatpush1.msra.mxu0 0.0
        %942 = vmatprep.subr.mxu0 0.0
        %943 = vmatpush1.msra.mxu0 0.0
        %944 = vmatprep.subr.mxu0 0.0
        %945 = vmatpush1.msra.mxu0 0.0
        %946 = vmatprep.subr.mxu0 0.0
        %947 = vmatpush1.msra.mxu0 0.0
        %948 = vmatprep.subr.mxu0 0.0
        %949 = vmatpush1.msra.mxu0 0.0
        %950 = vmatprep.mubr.f32.mxu0 0.0
        %951 = vmatmul.mubr.f32.gmra.mrb[0].mxu0 %v884
        %v952 = vpop.f32.mrb[0].mxu0
        %v953 = vadd.f32 %v860, %v952
        %v954 = vpop.f32.mrb[0].mxu0
        %955 = vdwg.mxu0
        %vm956 = vcmask 80896
        %957 = vst.msk [vmem:[%s245] sm:$0xff] %vm956, %v953
        %s958 = sand.u32 %s159, 1
        %s959 = scalar_lea.sflag [#allocation3], %s958
        %s960 = sand.u32 %s159, 1
        %s961 = smul.addr %s960, 8
        %s962 = scalar_lea.vmem [#allocation2], %s961
        // Predicated region
        $region45: #{tpu_custom_call.1} parent=43 // pred_check
          %p963 = pneg %p169
        $region46: #{tpu_custom_call.1} parent=43 // pred_check_branch
          %965 = sbr.rel (%p963) target = $region48
        $region47: #{tpu_custom_call.1} parent=43 // pred_region
          %s967 = ssub.s32 128, 128
          %968 = vsyncadd %s959, %s967
          %s969 = smul.addr %s20, 128
          %s970 = scalar_lea.hbm %s6, %s969
          %s972 = sshll.u32 %s962, 4
          %s973 = int_to_ptr.vmem [resolvable:$true] %s972
          %975 = dma.vmem_to_hbm [thread:$0]  %s973, 128, %s970, %s959
        $region48: #{tpu_custom_call.1} parent=43 // pred_fallthru
          _
      $region44: #{tpu_custom_call.1} parent=5 // pred_fallthru
        _
      %p976 = scmp.le.s32.totalorder 2, %s15
      // Predicated region
      $region49: #{tpu_custom_call.1} parent=5 // pred_check
        %p977 = pneg %p976
      $region50: #{tpu_custom_call.1} parent=5 // pred_check_branch
        %979 = sbr.rel (%p977) target = $region52
      $region51: #{tpu_custom_call.1} parent=5 // pred_region
        %s980 = ssub.s32 %s15, 2
        // Predicated region
        $region53: #{tpu_custom_call.1} parent=51 // pred_check
          %p981 = pneg %p175
        $region54: #{tpu_custom_call.1} parent=51 // pred_check_branch
          %983 = sbr.rel (%p981) target = $region56
        $region55: #{tpu_custom_call.1} parent=51 // pred_region
          %s984 = sand.u32 %s160, 1
          %s985 = scalar_lea.sflag [#allocation3], %s984
          %s986 = sand.u32 %s160, 1
          %s987 = smul.addr %s986, 8
          %s988 = scalar_lea.vmem [#allocation2], %s987
          %989 = dma.done %s985, 128
        $region56: #{tpu_custom_call.1} parent=51 // pred_fallthru
          _
      $region52: #{tpu_custom_call.1} parent=5 // pred_fallthru
        _
    $region6: #{tpu_custom_call.1} parent=1 // loop_footer
      %s19 = sadd.s32 1, %s15
    $region7: #{tpu_custom_call.1} parent=1 // loop_footer_branch
      %14 = sbr.rel target = $region3
    $region8: #{tpu_custom_call.1} parent=1 // loop_exit
      _
    %990 = vsyncpa [#allocation3], 1
    %s991 = scalar_lea.sflag [#allocation3], 1
    %992 = vsyncpa %s991, 1

</llo_original>
